<compile_context>
chip_gen: v7x
topology: tpu7x:2x2x1
jax: 0.10.0
libtpu: 0.0.40
codegen_flags: <defaults>
</compile_context>

<pallas_src>
import math

import jax
import jax.numpy as jnp
from jax.experimental import pallas as pl
from jax.experimental.pallas import tpu as pltpu


_SUBLANE = {4: 8, 2: 16, 1: 32}  # itemsize -> sublane multiple


def _round_up(a, b):
    return -(-a // b) * b


def _vmem_capacity_bytes():
    """Physical VMEM of the current chip (conservative 64 MiB fallback)."""
    try:
        info = pltpu.get_tpu_info()
        cap = int(getattr(info, "vmem_capacity_bytes", 0) or 0)
        if cap > 0:
            return cap
    except Exception:
        pass
    return 64 * 1024 * 1024


def _vmem_need(tm, tk, dim_pad, esize, out_esize, use_acc):
    """Approximate VMEM bytes: double-buffered tiles (+ f32 acc scratch)."""
    need = 2 * esize * (tm * dim_pad        # x tile
                        + dim_pad * tk      # W1 column slice
                        + 8 * tk            # b1 slice (sublane-padded)
                        + tk * dim_pad      # W2 row slice
                        + 8 * dim_pad)      # b2
    need += 2 * out_esize * tm * dim_pad    # output tile
    if use_acc:
        need += 4 * tm * dim_pad            # f32 accumulator scratch
    return need


def _ffn_kernel_acc(x_ref, w1_ref, b1_ref, w2_ref, b2_ref, o_ref, acc_ref):
    """Variant with f32 VMEM accumulator (used when the output dtype != f32).

    x_ref : (tm, dim_pad)   -- block index constant in k (resident across k)
    w1_ref: (dim_pad, tk)   -- k-th column slice of W1
    b1_ref: (1, tk)
    w2_ref: (tk, dim_pad)   -- k-th row slice of W2
    b2_ref: (1, dim_pad)
    o_ref : (tm, dim_pad)
    acc_ref: (tm, dim_pad) f32 scratch
    """
    k = pl.program_id(1)

    @pl.when(k == 0)
    def _():
        acc_ref[...] = jnp.zeros_like(acc_ref)

    h = jnp.dot(x_ref[...], w1_ref[...], preferred_element_type=jnp.float32)
    h = h + b1_ref[...]
    h = h * jax.nn.sigmoid(h)  # Swish; sigmoid rides the EUP slot.
    # TODO(synk): dropout(p=0.0) is identity; nonzero p would need pltpu PRNG.

    acc_ref[...] += jnp.dot(h.astype(w2_ref.dtype), w2_ref[...],
                            preferred_element_type=jnp.float32)

    @pl.when(k == pl.num_programs(1) - 1)
    def _():
        o_ref[...] = (acc_ref[...] + b2_ref[...]).astype(o_ref.dtype)


def _ffn_kernel_inplace(x_ref, w1_ref, b1_ref, w2_ref, b2_ref, o_ref):
    """f32-output variant: accumulate directly into the resident output block
    (no separate acc scratch -> extra VMEM headroom, notably on v7x)."""
    k = pl.program_id(1)

    @pl.when(k == 0)
    def _():
        o_ref[...] = jnp.zeros_like(o_ref)

    h = jnp.dot(x_ref[...], w1_ref[...], preferred_element_type=jnp.float32)
    h = h + b1_ref[...]
    h = h * jax.nn.sigmoid(h)
    # TODO(synk): dropout(p=0.0) is identity; nonzero p would need pltpu PRNG.

    o_ref[...] += jnp.dot(h.astype(w2_ref.dtype), w2_ref[...],
                          preferred_element_type=jnp.float32)

    @pl.when(k == pl.num_programs(1) - 1)
    def _():
        o_ref[...] += b2_ref[...].astype(jnp.float32)


def feed_forward(x, w1, b1, w2, b2, *, tm=512, tk=1024):
    """x: (batch, seq, dim) -> (batch, seq, dim).  y = swish(x@W1+b1)@W2 + b2.

    Works for f32 or bf16 inputs/weights (bf16 uses f32 MXU accumulation)."""
    batch, seq, dim = x.shape
    hidden = w1.shape[1]
    m = batch * seq

    dtype = x.dtype
    esize = jnp.dtype(dtype).itemsize
    out_esize = esize
    use_acc = dtype != jnp.float32          # f32 output accumulates in-place
    sub = _SUBLANE.get(esize, 8)

    dim_pad = _round_up(dim, 128)
    hidden_pad = _round_up(hidden, 128)

    # --- tile selection, fitted to ~85% of this chip's physical VMEM ---------
    vmem_cap = _vmem_capacity_bytes()
    budget = int(0.85 * vmem_cap)
    tm_eff = min(_round_up(tm, sub), _round_up(m, sub))
    tk_eff = min(_round_up(tk, 128), hidden_pad)
    while (tk_eff > 128 and
           _vmem_need(tm_eff, tk_eff, dim_pad, esize, out_esize, use_acc) > budget):
        tk_eff = max(128, _round_up(tk_eff // 2, 128))
    while (tm_eff > sub and
           _vmem_need(tm_eff, tk_eff, dim_pad, esize, out_esize, use_acc) > budget):
        tm_eff = max(sub, _round_up(tm_eff // 2, sub))

    m_pad = _round_up(m, tm_eff)
    # Pad hidden UP to a multiple of tk (exact by construction: padded W1
    # cols / b1 entries are 0 -> swish(0)=0 -> zero contribution through the
    # zero-padded W2 rows) instead of shrinking tk toward 128.
    hidden_pad = _round_up(hidden_pad, tk_eff)

    # --- lane-dense padding; all pads are skipped when already aligned ------
    # (For repeated calls with ragged dim/hidden, pre-pad weights once outside
    #  this function to keep the W1/W2 copies off the per-call path.)
    x2d = x.reshape(m, dim)
    if (m_pad, dim_pad) != (m, dim):
        x2d = jnp.pad(x2d, ((0, m_pad - m), (0, dim_pad - dim)))
    w1p = w1 if w1.shape == (dim_pad, hidden_pad) else jnp.pad(
        w1, ((0, dim_pad - dim), (0, hidden_pad - hidden)))
    b1p = b1.reshape(1, hidden)
    if hidden_pad != hidden:
        b1p = jnp.pad(b1p, ((0, 0), (0, hidden_pad - hidden)))
    w2p = w2 if w2.shape == (hidden_pad, dim_pad) else jnp.pad(
        w2, ((0, hidden_pad - hidden), (0, dim_pad - dim)))
    b2p = b2.reshape(1, dim)
    if dim_pad != dim:
        b2p = jnp.pad(b2p, ((0, 0), (0, dim_pad - dim)))

    need = _vmem_need(tm_eff, tk_eff, dim_pad, esize, out_esize, use_acc)
    vmem_limit = int(min(vmem_cap, max(need + (4 << 20), 32 << 20)))

    n_m_tiles = m_pad // tm_eff
    cost = pl.CostEstimate(
        flops=int(4 * m_pad * dim_pad * hidden_pad),
        transcendentals=int(m_pad * hidden_pad),
        bytes_accessed=int(
            esize * (x2d.size + m_pad * dim_pad)                   # x + out
            + n_m_tiles * esize * (w1p.size + b1p.size + w2p.size + b2p.size)),
    )

    if use_acc:
        kernel = _ffn_kernel_acc
        scratch = [pltpu.VMEM((tm_eff, dim_pad), jnp.float32)]
    else:
        kernel = _ffn_kernel_inplace
        scratch = []

    out2d = pl.pallas_call(
        kernel,
        out_shape=jax.ShapeDtypeStruct((m_pad, dim_pad), dtype),
        grid_spec=pltpu.PrefetchScalarGridSpec(
            num_scalar_prefetch=0,
            grid=(m_pad // tm_eff, hidden_pad // tk_eff),
            in_specs=[
                pl.BlockSpec((tm_eff, dim_pad), lambda i, k: (i, 0)),   # x tile
                pl.BlockSpec((dim_pad, tk_eff), lambda i, k: (0, k)),   # W1 cols
                pl.BlockSpec((1, tk_eff), lambda i, k: (0, k)),         # b1 slice
                pl.BlockSpec((tk_eff, dim_pad), lambda i, k: (k, 0)),   # W2 rows
                pl.BlockSpec((1, dim_pad), lambda i, k: (0, 0)),        # b2
            ],
            out_specs=pl.BlockSpec((tm_eff, dim_pad), lambda i, k: (i, 0)),
            scratch_shapes=scratch,
        ),
        compiler_params=pltpu.CompilerParams(
            dimension_semantics=("parallel", "arbitrary"),
            vmem_limit_bytes=vmem_limit),
        cost_estimate=cost,
    )(x2d, w1p, b1p, w2p, b2p)

    return out2d[:m, :dim].reshape(batch, seq, dim)


def init_params(key, dim, mult=4, dtype=jnp.float32):
    """Deterministic init mimicking nn.Linear default (uniform +/- 1/sqrt(fan_in))."""
    hidden = dim * mult
    k1, k2, k3, k4 = jax.random.split(key, 4)
    bound1 = 1.0 / math.sqrt(dim)
    bound2 = 1.0 / math.sqrt(hidden)
    w1 = jax.random.uniform(k1, (dim, hidden), jnp.float32, -bound1, bound1).astype(dtype)
    b1 = jax.random.uniform(k2, (hidden,), jnp.float32, -bound1, bound1).astype(dtype)
    w2 = jax.random.uniform(k3, (hidden, dim), jnp.float32, -bound2, bound2).astype(dtype)
    b2 = jax.random.uniform(k4, (dim,), jnp.float32, -bound2, bound2).astype(dtype)
    return w1, b1, w2, b2


def _reference(x, w1, b1, w2, b2):
    x, w1, b1, w2, b2 = (a.astype(jnp.float32) for a in (x, w1, b1, w2, b2))
    h = x @ w1 + b1
    h = h * jax.nn.sigmoid(h)
    return h @ w2 + b2


if __name__ == "__main__":
    key = jax.random.PRNGKey(0)

    # Test 1: small f32 demo shape (in-place f32 accumulation path).
    batch, seq, dim, mult = 2, 8, 32, 4
    kx, kp, key = jax.random.split(key, 3)
    x = jax.random.normal(kx, (batch, seq, dim), jnp.float32)
    w1, b1, w2, b2 = init_params(kp, dim, mult)
    out = jax.block_until_ready(feed_forward(x, w1, b1, w2, b2))
    ref = _reference(x, w1, b1, w2, b2)
    assert out.shape == (batch, seq, dim)
    assert jnp.allclose(out, ref, atol=1e-4, rtol=1e-4), "mismatch vs reference (test 1)"

    # Test 2: ragged shapes exercising the M / dim / hidden padding paths.
    batch2, seq2, dim2, mult2 = 2, 9, 48, 4
    kx2, kp2, key = jax.random.split(key, 3)
    x2 = jax.random.normal(kx2, (batch2, seq2, dim2), jnp.float32)
    w1b, b1b, w2b, b2b = init_params(kp2, dim2, mult2)
    out2 = jax.block_until_ready(feed_forward(x2, w1b, b1b, w2b, b2b))
    ref2 = _reference(x2, w1b, b1b, w2b, b2b)
    assert out2.shape == (batch2, seq2, dim2)
    assert jnp.allclose(out2, ref2, atol=1e-4, rtol=1e-4), "mismatch vs reference (test 2)"

    # Test 3: bf16 weights/activations (f32 acc scratch path, 16-sublane tm).
    batch3, seq3, dim3, mult3 = 2, 8, 64, 4
    kx3, kp3 = jax.random.split(key)
    x3 = jax.random.normal(kx3, (batch3, seq3, dim3), jnp.float32).astype(jnp.bfloat16)
    w1c, b1c, w2c, b2c = init_params(kp3, dim3, mult3, dtype=jnp.bfloat16)
    out3 = jax.block_until_ready(feed_forward(x3, w1c, b1c, w2c, b2c))
    ref3 = _reference(x3, w1c, b1c, w2c, b2c)
    assert out3.shape == (batch3, seq3, dim3)
    assert out3.dtype == jnp.bfloat16
    assert jnp.allclose(out3.astype(jnp.float32), ref3, atol=3e-2, rtol=3e-2), \
        "mismatch vs reference (test 3, bf16)"

    print("KERNEL_OK")
</pallas_src>

<mosaic_0001>
module attributes {stable_mosaic.version = 11 : i64} {
  func.func @_ffn_kernel_inplace(%arg0: i32, %arg1: i32, %arg2: memref<16x128xf32, #tpu.memory_space<vmem>>, %arg3: memref<128x128xf32, #tpu.memory_space<vmem>>, %arg4: memref<1x128xf32, #tpu.memory_space<vmem>>, %arg5: memref<128x128xf32, #tpu.memory_space<vmem>>, %arg6: memref<1x128xf32, #tpu.memory_space<vmem>>, %arg7: memref<16x128xf32, #tpu.memory_space<vmem>>) attributes {dimension_semantics = [#tpu.dimension_semantics<parallel>, #tpu.dimension_semantics<arbitrary>], iteration_bounds = array<i64: 1, 1>, scalar_prefetch = 0 : i64, scratch_operands = 0 : i64, tpu.core_type = #tpu.core_type<tc>, window_params = [{transform_indices = @transform_0, window_bounds = array<i64: 16, 128>}, {transform_indices = @transform_1, window_bounds = array<i64: 128, 128>}, {transform_indices = @transform_2, window_bounds = array<i64: 1, 128>}, {transform_indices = @transform_3, window_bounds = array<i64: 128, 128>}, {pipeline_mode = #tpu.pipeline_mode<synchronous>, transform_indices = @transform_4, window_bounds = array<i64: 1, 128>}, {transform_indices = @transform_5, window_bounds = array<i64: 16, 128>}]} {
    %c0_i32 = arith.constant 0 : i32
    %0 = arith.cmpi eq, %arg1, %c0_i32 : i32
    %1 = arith.extui %0 : i1 to i32
    %c0_i32_0 = arith.constant 0 : i32
    %2 = arith.cmpi ne, %1, %c0_i32_0 : i32
    scf.if %2 {
      %cst_16 = arith.constant 0.000000e+00 : f32
      %23 = vector.broadcast %cst_16 : f32 to vector<16x128xf32>
      %c0_17 = arith.constant 0 : index
      %c0_18 = arith.constant 0 : index
      %24 = vector.load %arg7[%c0_17, %c0_18] : memref<16x128xf32, #tpu.memory_space<vmem>>, vector<16x128xf32>
      tpu.vector_store %arg7[%c0_17, %c0_18], %23 {strides = array<i32>} : memref<16x128xf32, #tpu.memory_space<vmem>>, vector<16x128xf32>,
    } else {
    }
    %c0 = arith.constant 0 : index
    %c0_1 = arith.constant 0 : index
    %3 = vector.load %arg2[%c0, %c0_1] : memref<16x128xf32, #tpu.memory_space<vmem>>, vector<16x128xf32>
    %c0_2 = arith.constant 0 : index
    %c0_3 = arith.constant 0 : index
    %4 = vector.load %arg3[%c0_2, %c0_3] : memref<128x128xf32, #tpu.memory_space<vmem>>, vector<128x128xf32>
    %cst = arith.constant dense<0.000000e+00> : vector<16x128xf32>
    %5 = tpu.matmul %3, %4, %cst {dimension_numbers = #tpu.dot_dimension_numbers<[1], [0], [0], [1], [0, 0, 1, 1], [], []>} : vector<16x128xf32>, vector<128x128xf32>, vector<16x128xf32> -> vector<16x128xf32>
    %c0_4 = arith.constant 0 : index
    %c0_5 = arith.constant 0 : index
    %6 = vector.load %arg4[%c0_4, %c0_5] : memref<1x128xf32, #tpu.memory_space<vmem>>, vector<1x128xf32>
    %7 = vector.broadcast %6 : vector<1x128xf32> to vector<16x128xf32>
    %8 = arith.addf %5, %7 : vector<16x128xf32>
    %9 = arith.negf %8 : vector<16x128xf32>
    %10 = math.exp %9 : vector<16x128xf32>
    %cst_6 = arith.constant 1.000000e+00 : f32
    %11 = vector.broadcast %cst_6 : f32 to vector<16x128xf32>
    %12 = arith.addf %11, %10 : vector<16x128xf32>
    %13 = arith.divf %11, %12 : vector<16x128xf32>
    %14 = arith.mulf %8, %13 : vector<16x128xf32>
    %c0_7 = arith.constant 0 : index
    %c0_8 = arith.constant 0 : index
    %15 = vector.load %arg7[%c0_7, %c0_8] : memref<16x128xf32, #tpu.memory_space<vmem>>, vector<16x128xf32>
    %c0_9 = arith.constant 0 : index
    %c0_10 = arith.constant 0 : index
    %16 = vector.load %arg5[%c0_9, %c0_10] : memref<128x128xf32, #tpu.memory_space<vmem>>, vector<128x128xf32>
    %cst_11 = arith.constant dense<0.000000e+00> : vector<16x128xf32>
    %17 = tpu.matmul %14, %16, %cst_11 {dimension_numbers = #tpu.dot_dimension_numbers<[1], [0], [0], [1], [0, 0, 1, 1], [], []>} : vector<16x128xf32>, vector<128x128xf32>, vector<16x128xf32> -> vector<16x128xf32>
    %18 = arith.addf %15, %17 : vector<16x128xf32>
    %c0_12 = arith.constant 0 : index
    %c0_13 = arith.constant 0 : index
    %19 = vector.load %arg7[%c0_12, %c0_13] : memref<16x128xf32, #tpu.memory_space<vmem>>, vector<16x128xf32>
    tpu.vector_store %arg7[%c0_12, %c0_13], %18 {strides = array<i32>} : memref<16x128xf32, #tpu.memory_space<vmem>>, vector<16x128xf32>,
    %c0_i32_14 = arith.constant 0 : i32
    %20 = arith.cmpi eq, %arg1, %c0_i32_14 : i32
    %21 = arith.extui %20 : i1 to i32
    %c0_i32_15 = arith.constant 0 : i32
    %22 = arith.cmpi ne, %21, %c0_i32_15 : i32
    scf.if %22 {
      %c0_16 = arith.constant 0 : index
      %c0_17 = arith.constant 0 : index
      %23 = vector.load %arg7[%c0_16, %c0_17] : memref<16x128xf32, #tpu.memory_space<vmem>>, vector<16x128xf32>
      %c0_18 = arith.constant 0 : index
      %c0_19 = arith.constant 0 : index
      %24 = vector.load %arg6[%c0_18, %c0_19] : memref<1x128xf32, #tpu.memory_space<vmem>>, vector<1x128xf32>
      %25 = vector.broadcast %24 : vector<1x128xf32> to vector<16x128xf32>
      %26 = arith.addf %23, %25 : vector<16x128xf32>
      %c0_20 = arith.constant 0 : index
      %c0_21 = arith.constant 0 : index
      %27 = vector.load %arg7[%c0_20, %c0_21] : memref<16x128xf32, #tpu.memory_space<vmem>>, vector<16x128xf32>
      tpu.vector_store %arg7[%c0_20, %c0_21], %26 {strides = array<i32>} : memref<16x128xf32, #tpu.memory_space<vmem>>, vector<16x128xf32>,
    } else {
    }
    return
  }
  func.func @transform_0(%arg0: i32, %arg1: i32) -> (i32, i32) {
    %c0_i32 = arith.constant 0 : i32
    %c0_i32_0 = arith.constant 0 : i32
    return %arg0, %c0_i32 : i32, i32
  }
  func.func @transform_1(%arg0: i32, %arg1: i32) -> (i32, i32) {
    %c0_i32 = arith.constant 0 : i32
    %c0_i32_0 = arith.constant 0 : i32
    return %c0_i32, %arg1 : i32, i32
  }
  func.func @transform_2(%arg0: i32, %arg1: i32) -> (i32, i32) {
    %c0_i32 = arith.constant 0 : i32
    %c0_i32_0 = arith.constant 0 : i32
    return %c0_i32, %arg1 : i32, i32
  }
  func.func @transform_3(%arg0: i32, %arg1: i32) -> (i32, i32) {
    %c0_i32 = arith.constant 0 : i32
    %c0_i32_0 = arith.constant 0 : i32
    return %arg1, %c0_i32 : i32, i32
  }
  func.func @transform_4(%arg0: i32, %arg1: i32) -> (i32, i32) {
    %c0_i32 = arith.constant 0 : i32
    %c0_i32_0 = arith.constant 0 : i32
    %c0_i32_1 = arith.constant 0 : i32
    return %c0_i32, %c0_i32_0 : i32, i32
  }
  func.func @transform_5(%arg0: i32, %arg1: i32) -> (i32, i32) {
    %c0_i32 = arith.constant 0 : i32
    %c0_i32_0 = arith.constant 0 : i32
    return %arg0, %c0_i32 : i32, i32
  }
}

</mosaic_0001>

<llo_original>
// kernel: tpu_custom_call.1
$region0: #{tpu_custom_call.1}
  #allocation0 [shape = 'u32[]', space=smem, size = 0x4, offset = 0x4, fixed_abs, tag = 'smem constant byte address 0x4 - core index']
  #allocation1 [shape = 'u32[144,128]{1,0:T(1,128)}', space=vmem, size = 0x12000, scoped, tag = 'internal scratch']
  %s0 = inlined_call_operand.hbm [shape: f32[16,128], index: 0, kind: input, shape index: {}]
  %s1 = inlined_call_operand.hbm [shape: f32[128,128], index: 1, kind: input, shape index: {}]
  %s2 = inlined_call_operand.vmem [shape: f32[1,128], index: 2, kind: input, shape index: {}]
  %s3 = inlined_call_operand.hbm [shape: f32[128,128], index: 3, kind: input, shape index: {}]
  %s4 = inlined_call_operand.vmem [shape: f32[1,128], index: 4, kind: input, shape index: {}]
  %s5 = inlined_call_operand.hbm [shape: f32[16,128], index: 5, kind: output, shape index: {}]
  %s6 = sld [smem:[#allocation0]]
  $region50: #{tpu_custom_call.1} parent=0
    _
  %s8 = ssub.s32 1, %s6
  %s9 = scalar_select 0, %s8, %s6
  $region1: #{tpu_custom_call.1} parent=0
    #allocation2 [shape = 'u8[8192]{0}', space=vmem, size = 0x2000, scoped, tag = 'input window, operand 0, single buffered']
    #allocation3 [shape = 's32[1]{0}', space=sflag, size = 0x4, scoped, tag = 'scoped memory for tpu_custom_call.1']
    #allocation4 [shape = 's32[1]{0}', space=sflag, size = 0x4, scoped, tag = 'scoped memory for tpu_custom_call.1']
    #allocation5 [shape = 'u8[65536]{0}', space=vmem, size = 0x10000, scoped, tag = 'input window, operand 1, single buffered']
    #allocation6 [shape = 's32[1]{0}', space=sflag, size = 0x4, scoped, tag = 'scoped memory for tpu_custom_call.1']
    #allocation7 [shape = 'u8[65536]{0}', space=vmem, size = 0x10000, scoped, tag = 'input window, operand 3, single buffered']
    #allocation8 [shape = 'u8[8192]{0}', space=vmem, size = 0x2000, scoped, tag = 'output window, operand 0, single buffered']
    %10 = vsyncpa [#allocation3], 0
    %11 = vsyncpa [#allocation6], 0
    %12 = vsyncpa [#allocation4], 0
    // Predicated region
    $region2: #{tpu_custom_call.1} parent=1 // pred_check
      _
    $region3: #{tpu_custom_call.1} parent=1 // pred_check_branch
      %14 = sbr.rel (0) target = $region5
    $region4: #{tpu_custom_call.1} parent=1 // pred_region
      %s16 = ssub.s32 256, 256
      %17 = vsyncadd [#allocation3], %s16
      %s18 = sshll.u32 [#allocation2], 4
      %s19 = int_to_ptr.vmem [resolvable:$true] %s18
      %24 = dma.hbm_to_vmem [thread:$0]  %s0, 256, %s19, [#allocation3], 128, 128, 8
    $region5: #{tpu_custom_call.1} parent=1 // pred_fallthru
      _
    // Predicated region
    $region6: #{tpu_custom_call.1} parent=1 // pred_check
      _
    $region7: #{tpu_custom_call.1} parent=1 // pred_check_branch
      %26 = sbr.rel (0) target = $region9
    $region8: #{tpu_custom_call.1} parent=1 // pred_region
      %s28 = ssub.s32 2048, 2048
      %29 = vsyncadd [#allocation6], %s28
      %s30 = sshll.u32 [#allocation5], 4
      %s31 = int_to_ptr.vmem [resolvable:$true] %s30
      %36 = dma.hbm_to_vmem [thread:$0]  %s1, 2048, %s31, [#allocation6], 128, 128, 8
    $region9: #{tpu_custom_call.1} parent=1 // pred_fallthru
      _
    // Predicated region
    $region10: #{tpu_custom_call.1} parent=1 // pred_check
      _
    $region11: #{tpu_custom_call.1} parent=1 // pred_check_branch
      %38 = sbr.rel (0) target = $region13
    $region12: #{tpu_custom_call.1} parent=1 // pred_region
      _
    $region13: #{tpu_custom_call.1} parent=1 // pred_fallthru
      _
    // Predicated region
    $region14: #{tpu_custom_call.1} parent=1 // pred_check
      _
    $region15: #{tpu_custom_call.1} parent=1 // pred_check_branch
      %40 = sbr.rel (0) target = $region17
    $region16: #{tpu_custom_call.1} parent=1 // pred_region
      %s42 = ssub.s32 2048, 2048
      %43 = vsyncadd [#allocation6], %s42
      %s44 = sshll.u32 [#allocation7], 4
      %s45 = int_to_ptr.vmem [resolvable:$true] %s44
      %50 = dma.hbm_to_vmem [thread:$0]  %s3, 2048, %s45, [#allocation6], 128, 128, 8
    $region17: #{tpu_custom_call.1} parent=1 // pred_fallthru
      _
    // Predicated region
    $region18: #{tpu_custom_call.1} parent=1 // pred_check
      _
    $region19: #{tpu_custom_call.1} parent=1 // pred_check_branch
      %52 = sbr.rel (0) target = $region21
    $region20: #{tpu_custom_call.1} parent=1 // pred_region
      _
    $region21: #{tpu_custom_call.1} parent=1 // pred_fallthru
      _
    // Predicated region
    $region22: #{tpu_custom_call.1} parent=1 // pred_check
      _
    $region23: #{tpu_custom_call.1} parent=1 // pred_check_branch
      %54 = sbr.rel (0) target = $region25
    $region24: #{tpu_custom_call.1} parent=1 // pred_region
      %55 = dma.done [#allocation3], 256
    $region25: #{tpu_custom_call.1} parent=1 // pred_fallthru
      _
    // Predicated region
    $region26: #{tpu_custom_call.1} parent=1 // pred_check
      _
    $region27: #{tpu_custom_call.1} parent=1 // pred_check_branch
      %57 = sbr.rel (0) target = $region29
    $region28: #{tpu_custom_call.1} parent=1 // pred_region
      %58 = dma.done [#allocation6], 2048
    $region29: #{tpu_custom_call.1} parent=1 // pred_fallthru
      _
    // Predicated region
    $region30: #{tpu_custom_call.1} parent=1 // pred_check
      _
    $region31: #{tpu_custom_call.1} parent=1 // pred_check_branch
      %60 = sbr.rel (0) target = $region33
    $region32: #{tpu_custom_call.1} parent=1 // pred_region
      %61 = dma.done [#allocation6], 2048
    $region33: #{tpu_custom_call.1} parent=1 // pred_fallthru
      _
    %p62 = scmp.eq.s32.totalorder 0, 0
    // Predicated region
    $region34: #{tpu_custom_call.1} parent=1 // pred_check
      %p63 = pneg %p62
    $region35: #{tpu_custom_call.1} parent=1 // pred_check_branch
      %65 = sbr.rel (%p63) target = $region37
    $region36: #{tpu_custom_call.1} parent=1 // pred_region
      %66 = vst [vmem:[#allocation8] sm:$0xff] 0.0
      %67 = vst [vmem:[#allocation8 + $0x8] sm:$0xff] 0.0
    $region37: #{tpu_custom_call.1} parent=1 // pred_fallthru
      _
    %v68 = vld [vmem:[#allocation2] sm:$0xff]
    %v69 = vld [vmem:[#allocation2 + $0x8] sm:$0xff]
    %v70 = vld [vmem:[#allocation5] sm:$0xff]
    %v71 = vld [vmem:[#allocation5 + $0x8] sm:$0xff]
    %v72 = vld [vmem:[#allocation5 + $0x10] sm:$0xff]
    %v73 = vld [vmem:[#allocation5 + $0x18] sm:$0xff]
    %v74 = vld [vmem:[#allocation5 + $0x20] sm:$0xff]
    %v75 = vld [vmem:[#allocation5 + $0x28] sm:$0xff]
    %v76 = vld [vmem:[#allocation5 + $0x30] sm:$0xff]
    %v77 = vld [vmem:[#allocation5 + $0x38] sm:$0xff]
    %v78 = vld [vmem:[#allocation5 + $0x40] sm:$0xff]
    %v79 = vld [vmem:[#allocation5 + $0x48] sm:$0xff]
    %v80 = vld [vmem:[#allocation5 + $0x50] sm:$0xff]
    %v81 = vld [vmem:[#allocation5 + $0x58] sm:$0xff]
    %v82 = vld [vmem:[#allocation5 + $0x60] sm:$0xff]
    %v83 = vld [vmem:[#allocation5 + $0x68] sm:$0xff]
    %v84 = vld [vmem:[#allocation5 + $0x70] sm:$0xff]
    %v85 = vld [vmem:[#allocation5 + $0x78] sm:$0xff]
    %v86 = vld [vmem:[%s2] sm:$0x1]
    %v88 = vlaneseq
    %v89 = vshrl.u32 %v88, 7
    %v90 = vsub.s32 0, %v89
    %v91 = vrot.slane %v86, %v90
    %93 = vmatprep.subr.mxu0 0.0
    %94 = vmatpush1.msra.mxu0 %v70
    %95 = vmatprep.subr.mxu0 0.0
    %96 = vmatpush1.msra.mxu0 %v71
    %97 = vmatprep.subr.mxu0 0.0
    %98 = vmatpush1.msra.mxu0 %v72
    %99 = vmatprep.subr.mxu0 0.0
    %100 = vmatpush1.msra.mxu0 %v73
    %101 = vmatprep.subr.mxu0 0.0
    %102 = vmatpush1.msra.mxu0 %v74
    %103 = vmatprep.subr.mxu0 0.0
    %104 = vmatpush1.msra.mxu0 %v75
    %105 = vmatprep.subr.mxu0 0.0
    %106 = vmatpush1.msra.mxu0 %v76
    %107 = vmatprep.subr.mxu0 0.0
    %108 = vmatpush1.msra.mxu0 %v77
    %109 = vmatprep.subr.mxu0 0.0
    %110 = vmatpush1.msra.mxu0 %v78
    %111 = vmatprep.subr.mxu0 0.0
    %112 = vmatpush1.msra.mxu0 %v79
    %113 = vmatprep.subr.mxu0 0.0
    %114 = vmatpush1.msra.mxu0 %v80
    %115 = vmatprep.subr.mxu0 0.0
    %116 = vmatpush1.msra.mxu0 %v81
    %117 = vmatprep.subr.mxu0 0.0
    %118 = vmatpush1.msra.mxu0 %v82
    %119 = vmatprep.subr.mxu0 0.0
    %120 = vmatpush1.msra.mxu0 %v83
    %121 = vmatprep.subr.mxu0 0.0
    %122 = vmatpush1.msra.mxu0 %v84
    %123 = vmatprep.subr.mxu0 0.0
    %124 = vmatpush1.msra.mxu0 %v85
    %125 = vmatprep.subr.mxu0 0.0
    %126 = vmatpush1.msra.mxu0 0.0
    %127 = vmatprep.subr.mxu0 0.0
    %128 = vmatpush1.msra.mxu0 0.0
    %129 = vmatprep.subr.mxu0 0.0
    %130 = vmatpush1.msra.mxu0 0.0
    %131 = vmatprep.subr.mxu0 0.0
    %132 = vmatpush1.msra.mxu0 0.0
    %133 = vmatprep.subr.mxu0 0.0
    %134 = vmatpush1.msra.mxu0 0.0
    %135 = vmatprep.subr.mxu0 0.0
    %136 = vmatpush1.msra.mxu0 0.0
    %137 = vmatprep.subr.mxu0 0.0
    %138 = vmatpush1.msra.mxu0 0.0
    %139 = vmatprep.subr.mxu0 0.0
    %140 = vmatpush1.msra.mxu0 0.0
    %141 = vmatprep.subr.mxu0 0.0
    %142 = vmatpush1.msra.mxu0 0.0
    %143 = vmatprep.subr.mxu0 0.0
    %144 = vmatpush1.msra.mxu0 0.0
    %145 = vmatprep.subr.mxu0 0.0
    %146 = vmatpush1.msra.mxu0 0.0
    %147 = vmatprep.subr.mxu0 0.0
    %148 = vmatpush1.msra.mxu0 0.0
    %149 = vmatprep.subr.mxu0 0.0
    %150 = vmatpush1.msra.mxu0 0.0
    %151 = vmatprep.subr.mxu0 0.0
    %152 = vmatpush1.msra.mxu0 0.0
    %153 = vmatprep.subr.mxu0 0.0
    %154 = vmatpush1.msra.mxu0 0.0
    %155 = vmatprep.subr.mxu0 0.0
    %156 = vmatpush1.msra.mxu0 0.0
    %157 = vmatprep.mubr.f32.mxu0 0.0
    %158 = vmatmul.mubr.f32.gmra.mrb[0].mxu0 %v68
    %v159 = vpop.f32.mrb[0].mxu0
    %v160 = vadd.f32 %v91, %v159
    %v161 = vpop.f32.mrb[0].mxu0
    %162 = vmatprep.mubr.f32.mxu0 0.0
    %163 = vmatmul.mubr.f32.gmra.mrb[0].mxu0 %v69
    %v164 = vpop.f32.mrb[0].mxu0
    %v165 = vadd.f32 %v91, %v164
    %v166 = vpop.f32.mrb[0].mxu0
    %167 = vdwg.mxu0
    %v168 = vxor.u32 %v160, 2147483648
    %v169 = vxor.u32 %v165, 2147483648
    %v170 = vmul.f32 %v168, 1.442695
    %v171 = vpow.pop %v170
    %v172 = vmul.f32 %v169, 1.442695
    %v173 = vpow.pop %v172
    %v174 = vadd.f32 %v171, 1.0
    %v175 = vadd.f32 %v173, 1.0
    %v176 = vrcp.pop %v174
    %v177 = vmul.f32 1.0, %v176
    %v178 = vrcp.pop %v175
    %v179 = vmul.f32 1.0, %v178
    %v180 = vmul.f32 %v160, %v177
    %v181 = vmul.f32 %v165, %v179
    %v182 = vld [vmem:[#allocation8] sm:$0xff]
    %v183 = vld [vmem:[#allocation8 + $0x8] sm:$0xff]
    %v184 = vld [vmem:[#allocation7] sm:$0xff]
    %v185 = vld [vmem:[#allocation7 + $0x8] sm:$0xff]
    %v186 = vld [vmem:[#allocation7 + $0x10] sm:$0xff]
    %v187 = vld [vmem:[#allocation7 + $0x18] sm:$0xff]
    %v188 = vld [vmem:[#allocation7 + $0x20] sm:$0xff]
    %v189 = vld [vmem:[#allocation7 + $0x28] sm:$0xff]
    %v190 = vld [vmem:[#allocation7 + $0x30] sm:$0xff]
    %v191 = vld [vmem:[#allocation7 + $0x38] sm:$0xff]
    %v192 = vld [vmem:[#allocation7 + $0x40] sm:$0xff]
    %v193 = vld [vmem:[#allocation7 + $0x48] sm:$0xff]
    %v194 = vld [vmem:[#allocation7 + $0x50] sm:$0xff]
    %v195 = vld [vmem:[#allocation7 + $0x58] sm:$0xff]
    %v196 = vld [vmem:[#allocation7 + $0x60] sm:$0xff]
    %v197 = vld [vmem:[#allocation7 + $0x68] sm:$0xff]
    %v198 = vld [vmem:[#allocation7 + $0x70] sm:$0xff]
    %v199 = vld [vmem:[#allocation7 + $0x78] sm:$0xff]
    %200 = vmatprep.subr.mxu0 0.0
    %201 = vmatpush1.msra.mxu0 %v184
    %202 = vmatprep.subr.mxu0 0.0
    %203 = vmatpush1.msra.mxu0 %v185
    %204 = vmatprep.subr.mxu0 0.0
    %205 = vmatpush1.msra.mxu0 %v186
    %206 = vmatprep.subr.mxu0 0.0
    %207 = vmatpush1.msra.mxu0 %v187
    %208 = vmatprep.subr.mxu0 0.0
    %209 = vmatpush1.msra.mxu0 %v188
    %210 = vmatprep.subr.mxu0 0.0
    %211 = vmatpush1.msra.mxu0 %v189
    %212 = vmatprep.subr.mxu0 0.0
    %213 = vmatpush1.msra.mxu0 %v190
    %214 = vmatprep.subr.mxu0 0.0
    %215 = vmatpush1.msra.mxu0 %v191
    %216 = vmatprep.subr.mxu0 0.0
    %217 = vmatpush1.msra.mxu0 %v192
    %218 = vmatprep.subr.mxu0 0.0
    %219 = vmatpush1.msra.mxu0 %v193
    %220 = vmatprep.subr.mxu0 0.0
    %221 = vmatpush1.msra.mxu0 %v194
    %222 = vmatprep.subr.mxu0 0.0
    %223 = vmatpush1.msra.mxu0 %v195
    %224 = vmatprep.subr.mxu0 0.0
    %225 = vmatpush1.msra.mxu0 %v196
    %226 = vmatprep.subr.mxu0 0.0
    %227 = vmatpush1.msra.mxu0 %v197
    %228 = vmatprep.subr.mxu0 0.0
    %229 = vmatpush1.msra.mxu0 %v198
    %230 = vmatprep.subr.mxu0 0.0
    %231 = vmatpush1.msra.mxu0 %v199
    %232 = vmatprep.subr.mxu0 0.0
    %233 = vmatpush1.msra.mxu0 0.0
    %234 = vmatprep.subr.mxu0 0.0
    %235 = vmatpush1.msra.mxu0 0.0
    %236 = vmatprep.subr.mxu0 0.0
    %237 = vmatpush1.msra.mxu0 0.0
    %238 = vmatprep.subr.mxu0 0.0
    %239 = vmatpush1.msra.mxu0 0.0
    %240 = vmatprep.subr.mxu0 0.0
    %241 = vmatpush1.msra.mxu0 0.0
    %242 = vmatprep.subr.mxu0 0.0
    %243 = vmatpush1.msra.mxu0 0.0
    %244 = vmatprep.subr.mxu0 0.0
    %245 = vmatpush1.msra.mxu0 0.0
    %246 = vmatprep.subr.mxu0 0.0
    %247 = vmatpush1.msra.mxu0 0.0
    %248 = vmatprep.subr.mxu0 0.0
    %249 = vmatpush1.msra.mxu0 0.0
    %250 = vmatprep.subr.mxu0 0.0
    %251 = vmatpush1.msra.mxu0 0.0
    %252 = vmatprep.subr.mxu0 0.0
    %253 = vmatpush1.msra.mxu0 0.0
    %254 = vmatprep.subr.mxu0 0.0
    %255 = vmatpush1.msra.mxu0 0.0
    %256 = vmatprep.subr.mxu0 0.0
    %257 = vmatpush1.msra.mxu0 0.0
    %258 = vmatprep.subr.mxu0 0.0
    %259 = vmatpush1.msra.mxu0 0.0
    %260 = vmatprep.subr.mxu0 0.0
    %261 = vmatpush1.msra.mxu0 0.0
    %262 = vmatprep.subr.mxu0 0.0
    %263 = vmatpush1.msra.mxu0 0.0
    %264 = vmatprep.mubr.f32.mxu0 0.0
    %265 = vmatmul.mubr.f32.gmra.mrb[0].mxu0 %v180
    %v266 = vpop.f32.mrb[0].mxu0
    %v267 = vadd.f32 0.0, %v266
    %v268 = vpop.f32.mrb[0].mxu0
    %269 = vmatprep.mubr.f32.mxu0 0.0
    %270 = vmatmul.mubr.f32.gmra.mrb[0].mxu0 %v181
    %v271 = vpop.f32.mrb[0].mxu0
    %v272 = vadd.f32 0.0, %v271
    %v273 = vpop.f32.mrb[0].mxu0
    %274 = vdwg.mxu0
    %v275 = vadd.f32 %v182, %v267
    %v276 = vadd.f32 %v183, %v272
    %277 = vst [vmem:[#allocation8] sm:$0xff] %v275
    %278 = vst [vmem:[#allocation8 + $0x8] sm:$0xff] %v276
    // Predicated region
    $region38: #{tpu_custom_call.1} parent=1 // pred_check
      %p279 = pneg %p62
    $region39: #{tpu_custom_call.1} parent=1 // pred_check_branch
      %281 = sbr.rel (%p279) target = $region41
    $region40: #{tpu_custom_call.1} parent=1 // pred_region
      %v282 = vld [vmem:[#allocation8] sm:$0xff]
      %v283 = vld [vmem:[#allocation8 + $0x8] sm:$0xff]
      %v284 = vld [vmem:[%s4] sm:$0x1]
      %v286 = vlaneseq
      %v287 = vshrl.u32 %v286, 7
      %v288 = vsub.s32 0, %v287
      %v289 = vrot.slane %v284, %v288
      %v291 = vadd.f32 %v282, %v289
      %v292 = vadd.f32 %v283, %v289
      %293 = vst [vmem:[#allocation8] sm:$0xff] %v291
      %294 = vst [vmem:[#allocation8 + $0x8] sm:$0xff] %v292
    $region41: #{tpu_custom_call.1} parent=1 // pred_fallthru
      _
    // Predicated region
    $region42: #{tpu_custom_call.1} parent=1 // pred_check
      _
    $region43: #{tpu_custom_call.1} parent=1 // pred_check_branch
      %296 = sbr.rel (0) target = $region45
    $region44: #{tpu_custom_call.1} parent=1 // pred_region
      %s298 = ssub.s32 256, 256
      %299 = vsyncadd [#allocation4], %s298
      %s300 = sshll.u32 [#allocation8], 4
      %s301 = int_to_ptr.vmem [resolvable:$true] %s300
      %306 = dma.vmem_to_hbm [thread:$0]  %s301, 256, %s5, [#allocation4], 128, 128, 8
    $region45: #{tpu_custom_call.1} parent=1 // pred_fallthru
      _
    // Predicated region
    $region46: #{tpu_custom_call.1} parent=1 // pred_check
      _
    $region47: #{tpu_custom_call.1} parent=1 // pred_check_branch
      %308 = sbr.rel (0) target = $region49
    $region48: #{tpu_custom_call.1} parent=1 // pred_region
      %309 = dma.done [#allocation4], 256
    $region49: #{tpu_custom_call.1} parent=1 // pred_fallthru
      _
    %310 = vsyncpa [#allocation3], 1
    %311 = vsyncpa [#allocation6], 1
    %312 = vsyncpa [#allocation4], 1

</llo_original>
